<compile_context>
chip_gen: v7x
topology: tpu7x:2x2x1
jax: 0.10.0
libtpu: 0.0.40
codegen_flags: <defaults>
</compile_context>

<pallas_src>
import functools
import math

import jax
import jax.numpy as jnp
from jax.experimental import pallas as pl
from jax.experimental.pallas import tpu as pltpu


def dwconv1d_eca_kernel(x_ref, wpw_ref, bpw_ref, wdw_ref, bdw_ref, weca_ref,
                        o_ref, *, K, L, Bt):
    P = K // 2

    # Constant loads hoisted out of the per-batch loop (one load per grid step).
    wpw = wpw_ref[...]                      # (C, C)  bf16, BN2 folded
    bpw = bpw_ref[...]                      # (C, 1)  f32
    bdw = bdw_ref[...]                      # (C, 1)  f32
    weca_c = weca_ref[...]                  # (C, 1)  f32, ECA centre tap
    taps = [wdw_ref[j] for j in range(K)]   # K x (C, 1) f32, BN1 folded
    C = wpw.shape[0]

    col = jax.lax.broadcasted_iota(jnp.int32, (C, L), 1)   # hoisted (no CSE in loop)
    inv_L = jnp.float32(1.0 / L)

    for b in range(Bt):                     # unrolled batch loop within the block
        xb = x_ref[b]                                               # (C, L) bf16

        # ---- pointwise conv (+ folded BN2): channel-mixing matmul on the MXU ----
        h = jnp.dot(wpw, xb, preferred_element_type=jnp.float32) + bpw   # (C, L) f32

        # ---- depthwise conv (+ folded BN1): K taps via lane roll (XLU) ----
        # Boundary handling: tap offset sign is static -> one compare per tap.
        acc = taps[P] * h                                           # d == 0 tap
        for j in range(K):
            d = j - P
            if d == 0:
                continue
            tap = pltpu.roll(h, shift=(-d) % L, axis=1)
            mask = (col >= -d) if d < 0 else (col < L - d)
            acc = acc + taps[j] * jnp.where(mask, tap, 0.0)
        hd = acc + bdw                                              # (C, L) f32

        # ---- ECA gate: avg-pool over L -> centre tap of grouped conv -> sigmoid ----
        y = jnp.sum(hd, axis=-1, keepdims=True) * inv_L             # (C, 1)
        gate = jax.nn.sigmoid(weca_c * y)                           # (C, 1)

        o_ref[b] = hd * gate


def _pick_block_batch(B, C, L, in_bytes=2, out_bytes=4,
                      act_budget=40 * 1024 * 1024, max_unroll=8):
    """Largest Bt (dividing B) whose double-buffered in+out blocks fit the
    activation budget, capped for unroll sanity, keeping grid length >= 2 so
    both v7x TensorCores get work."""
    per_b = 2 * C * L * (in_bytes + out_bytes)        # 2 pipeline buffers each
    bt = max(1, min(B, max_unroll, act_budget // max(per_b, 1)))
    if B >= 2:
        bt = min(bt, B // 2)                          # keep grid length >= 2
    bt = max(bt, 1)
    while B % bt:                                     # must tile B evenly
        bt -= 1
    return bt


def depthwise_conv1d_eca(x, params, *, eps=1e-5):
    """x: (B, C, L) float32; params: raw module parameters (see make_params)."""
    B, C, L = x.shape

    w_pw, b_pw = params['pw_w'], params['pw_b']          # (C, C), (C,)
    w_dw, b_dw = params['dw_w'], params['dw_b']          # (C, K), (C,)
    g2, be2, m2, v2 = params['bn2']                      # BN after pointwise
    g1, be1, m1, v1 = params['bn1']                      # BN after depthwise
    w_eca = params['eca_w']                              # (C, k_eca)
    K = w_dw.shape[1]
    k_eca = w_eca.shape[1]

    # ---- fold inference-mode BatchNorm into the adjacent convs (exact, f32) ----
    s2 = g2 / jnp.sqrt(v2 + eps)
    t2 = be2 - m2 * s2
    s1 = g1 / jnp.sqrt(v1 + eps)
    t1 = be1 - m1 * s1

    wpw_f = (s2[:, None] * w_pw).astype(jnp.bfloat16)              # (C, C) bf16 MXU operand
    bpw_f = (s2 * b_pw + t2)[:, None].astype(jnp.float32)          # (C, 1)
    wdw_f = jnp.transpose(s1[:, None] * w_dw)[:, :, None]          # (K, C, 1) pre-split taps
    wdw_f = wdw_f.astype(jnp.float32)
    bdw_f = (s1 * b_dw + t1)[:, None].astype(jnp.float32)          # (C, 1)
    weca_c = w_eca[:, k_eca // 2][:, None].astype(jnp.float32)     # (C, 1) centre tap only

    # bf16 activations into the kernel (halves the dominant HBM read);
    # accumulation is f32 and the output stays f32.
    x_bf = x.astype(jnp.bfloat16)

    Bt = _pick_block_batch(B, C, L)
    grid = (B // Bt,)

    # VMEM: double-buffered bf16 input + f32 output blocks, double-buffered
    # weights, plus headroom for in-kernel intermediates.  Clamped to fit the
    # smallest-VMEM part (v7x: 64 MiB), never below the 32 MiB scoped default.
    act_bytes = 2 * Bt * C * L * (2 + 4)
    weight_bytes = 2 * (C * C * 2 + 4 * C * (K + 3))
    scratch_bytes = 4 * Bt * C * L * 4 + (1 << 20)
    vmem_limit = int(min(max(act_bytes + weight_bytes + scratch_bytes,
                             32 * 1024 * 1024), 64 * 1024 * 1024))

    kernel = functools.partial(dwconv1d_eca_kernel, K=K, L=L, Bt=Bt)

    flops = 2 * B * C * C * L + 4 * B * C * L * K + 8 * B * C * L
    bytes_accessed = (2 * B * C * L                    # bf16 x in
                      + 4 * B * C * L                  # f32 out
                      + 2 * C * C + 4 * C * (K + 3))   # weights

    return pl.pallas_call(
        kernel,
        out_shape=jax.ShapeDtypeStruct((B, C, L), jnp.float32),
        grid_spec=pltpu.PrefetchScalarGridSpec(
            num_scalar_prefetch=0,
            grid=grid,
            in_specs=[
                pl.BlockSpec((Bt, C, L), lambda b: (b, 0, 0)),     # x (bf16)
                pl.BlockSpec((C, C), lambda b: (0, 0)),            # folded pointwise W (bf16)
                pl.BlockSpec((C, 1), lambda b: (0, 0)),            # folded pointwise bias
                pl.BlockSpec((K, C, 1), lambda b: (0, 0, 0)),      # folded depthwise taps
                pl.BlockSpec((C, 1), lambda b: (0, 0)),            # folded depthwise bias
                pl.BlockSpec((C, 1), lambda b: (0, 0)),            # ECA centre-tap weight
            ],
            out_specs=pl.BlockSpec((Bt, C, L), lambda b: (b, 0, 0)),
        ),
        compiler_params=pltpu.CompilerParams(
            dimension_semantics=("parallel",),
            vmem_limit_bytes=vmem_limit),
        cost_estimate=pl.CostEstimate(
            flops=flops, transcendentals=B * C, bytes_accessed=bytes_accessed),
    )(x_bf, wpw_f, bpw_f, wdw_f, bdw_f, weca_c)


def reference(x, params, eps=1e-5):
    """Pure-JAX f32 reference mirroring the PyTorch forward (eval-mode BN)."""
    w_pw, b_pw = params['pw_w'], params['pw_b']
    w_dw, b_dw = params['dw_w'], params['dw_b']
    g2, be2, m2, v2 = params['bn2']
    g1, be1, m1, v1 = params['bn1']
    w_eca = params['eca_w']
    C = x.shape[1]
    K = w_dw.shape[1]
    k_eca = w_eca.shape[1]

    def bn(z, g, be, m, v):
        return ((z - m[None, :, None]) / jnp.sqrt(v[None, :, None] + eps)
                * g[None, :, None] + be[None, :, None])

    p = jnp.einsum('oc,bcl->bol', w_pw, x) + b_pw[None, :, None]   # pointwise
    q = bn(p, g2, be2, m2, v2)                                     # bn2
    r = jax.lax.conv_general_dilated(                              # depthwise
        q, w_dw[:, None, :], window_strides=(1,), padding=[(K // 2, K // 2)],
        feature_group_count=C, dimension_numbers=('NCH', 'OIH', 'NCH'))
    r = r + b_dw[None, :, None]
    h = bn(r, g1, be1, m1, v1)                                     # bn1
    y = jnp.mean(h, axis=-1, keepdims=True)                        # ECA avg-pool
    yc = jax.lax.conv_general_dilated(                             # ECA grouped conv
        y, w_eca[:, None, :], window_strides=(1,),
        padding=[(k_eca // 2, k_eca // 2)],
        feature_group_count=C, dimension_numbers=('NCH', 'OIH', 'NCH'))
    return h * jax.nn.sigmoid(yc)


def make_params(key, C, K):
    # ECA kernel size formula from the module (gamma=2, b=1)
    t = int(abs((math.log2(C) + 1) / 2))
    k_eca = t if t % 2 else t + 1
    ks = jax.random.split(key, 12)
    n = lambda k, shape, s: s * jax.random.normal(k, shape, jnp.float32)
    return {
        'pw_w': n(ks[0], (C, C), 0.1),
        'pw_b': n(ks[1], (C,), 0.02),
        'dw_w': n(ks[2], (C, K), 0.3),
        'dw_b': n(ks[3], (C,), 0.02),
        'bn2': (1.0 + n(ks[4], (C,), 0.1),            # gamma
                n(ks[5], (C,), 0.1),                   # beta
                n(ks[6], (C,), 0.1),                   # running_mean
                1.0 + 0.1 * jnp.abs(jax.random.normal(ks[7], (C,), jnp.float32))),
        'bn1': (1.0 + n(ks[8], (C,), 0.1),
                n(ks[9], (C,), 0.1),
                n(ks[10], (C,), 0.1),
                1.0 + 0.1 * jnp.abs(jax.random.normal(ks[11], (C,), jnp.float32))),
        'eca_w': n(jax.random.fold_in(key, 99), (C, k_eca), 1.0),
    }


if __name__ == "__main__":
    B, C, L, K = 2, 32, 128, 3          # small, lane-aligned demo shapes

    key = jax.random.PRNGKey(0)
    kx, kp = jax.random.split(key)
    x = jax.random.normal(kx, (B, C, L), jnp.float32)
    params = make_params(kp, C, K)

    out = depthwise_conv1d_eca(x, params)
    out = jax.block_until_ready(out)

    ref = reference(x, params)
    assert out.shape == (B, C, L)
    # Tolerance reflects bf16 activations + bf16 MXU weights in the kernel vs.
    # the f32 reference (measured error ~1e-3; real bugs give O(0.1) errors).
    max_err = float(jnp.max(jnp.abs(out - ref)))
    assert jnp.allclose(out, ref, atol=1e-2, rtol=1e-2), (
        f"mismatch vs JAX reference, max|diff|={max_err}")

    print("KERNEL_OK")
</pallas_src>

<mosaic_0001>
module attributes {stable_mosaic.version = 11 : i64} {
  func.func @dwconv1d_eca_kernel(%arg0: i32, %arg1: memref<1x32x128xbf16, #tpu.memory_space<vmem>>, %arg2: memref<32x32xbf16, #tpu.memory_space<vmem>>, %arg3: memref<32x1xf32, #tpu.memory_space<vmem>>, %arg4: memref<3x32x1xf32, #tpu.memory_space<vmem>>, %arg5: memref<32x1xf32, #tpu.memory_space<vmem>>, %arg6: memref<32x1xf32, #tpu.memory_space<vmem>>, %arg7: memref<1x32x128xf32, #tpu.memory_space<vmem>>) attributes {dimension_semantics = [#tpu.dimension_semantics<parallel>], iteration_bounds = array<i64: 2>, scalar_prefetch = 0 : i64, scratch_operands = 0 : i64, tpu.core_type = #tpu.core_type<tc>, window_params = [{transform_indices = @transform_0, window_bounds = array<i64: 1, 32, 128>}, {pipeline_mode = #tpu.pipeline_mode<synchronous>, transform_indices = @transform_1, window_bounds = array<i64: 32, 32>}, {pipeline_mode = #tpu.pipeline_mode<synchronous>, transform_indices = @transform_2, window_bounds = array<i64: 32, 1>}, {pipeline_mode = #tpu.pipeline_mode<synchronous>, transform_indices = @transform_3, window_bounds = array<i64: 3, 32, 1>}, {pipeline_mode = #tpu.pipeline_mode<synchronous>, transform_indices = @transform_4, window_bounds = array<i64: 32, 1>}, {pipeline_mode = #tpu.pipeline_mode<synchronous>, transform_indices = @transform_5, window_bounds = array<i64: 32, 1>}, {transform_indices = @transform_6, window_bounds = array<i64: 1, 32, 128>}]} {
    %c0 = arith.constant 0 : index
    %c0_0 = arith.constant 0 : index
    %0 = vector.load %arg2[%c0, %c0_0] : memref<32x32xbf16, #tpu.memory_space<vmem>>, vector<32x32xbf16>
    %c0_1 = arith.constant 0 : index
    %c0_2 = arith.constant 0 : index
    %1 = vector.load %arg3[%c0_1, %c0_2] : memref<32x1xf32, #tpu.memory_space<vmem>>, vector<32x1xf32>
    %c0_3 = arith.constant 0 : index
    %c0_4 = arith.constant 0 : index
    %2 = vector.load %arg5[%c0_3, %c0_4] : memref<32x1xf32, #tpu.memory_space<vmem>>, vector<32x1xf32>
    %c0_5 = arith.constant 0 : index
    %c0_6 = arith.constant 0 : index
    %3 = vector.load %arg6[%c0_5, %c0_6] : memref<32x1xf32, #tpu.memory_space<vmem>>, vector<32x1xf32>
    %c0_7 = arith.constant 0 : index
    %c0_8 = arith.constant 0 : index
    %c0_9 = arith.constant 0 : index
    %4 = vector.load %arg4[%c0_7, %c0_8, %c0_9] : memref<3x32x1xf32, #tpu.memory_space<vmem>>, vector<1x32x1xf32>
    %5 = vector.shape_cast %4 : vector<1x32x1xf32> to vector<32x1xf32>
    %c1 = arith.constant 1 : index
    %c0_10 = arith.constant 0 : index
    %c0_11 = arith.constant 0 : index
    %6 = vector.load %arg4[%c1, %c0_10, %c0_11] : memref<3x32x1xf32, #tpu.memory_space<vmem>>, vector<1x32x1xf32>
    %7 = vector.shape_cast %6 : vector<1x32x1xf32> to vector<32x1xf32>
    %c2 = arith.constant 2 : index
    %c0_12 = arith.constant 0 : index
    %c0_13 = arith.constant 0 : index
    %8 = vector.load %arg4[%c2, %c0_12, %c0_13] : memref<3x32x1xf32, #tpu.memory_space<vmem>>, vector<1x32x1xf32>
    %9 = vector.shape_cast %8 : vector<1x32x1xf32> to vector<32x1xf32>
    %10 = tpu.iota {dimensions = array<i32: 1>} : vector<32x128xi32>
    %c0_14 = arith.constant 0 : index
    %c0_15 = arith.constant 0 : index
    %c0_16 = arith.constant 0 : index
    %11 = vector.load %arg1[%c0_14, %c0_15, %c0_16] : memref<1x32x128xbf16, #tpu.memory_space<vmem>>, vector<1x32x128xbf16>
    %12 = vector.shape_cast %11 : vector<1x32x128xbf16> to vector<32x128xbf16>
    %cst = arith.constant dense<0.000000e+00> : vector<32x128xf32>
    %13 = tpu.matmul %0, %12, %cst {dimension_numbers = #tpu.dot_dimension_numbers<[1], [0], [0], [1], [0, 0, 1, 1], [], []>} : vector<32x32xbf16>, vector<32x128xbf16>, vector<32x128xf32> -> vector<32x128xf32>
    %14 = vector.broadcast %1 : vector<32x1xf32> to vector<32x128xf32>
    %15 = arith.addf %13, %14 : vector<32x128xf32>
    %16 = vector.broadcast %7 : vector<32x1xf32> to vector<32x128xf32>
    %17 = arith.mulf %16, %15 : vector<32x128xf32>
    %c1_i32 = arith.constant 1 : i32
    %18 = tpu.dynamic_rotate %15 by %c1_i32 dim 1 : vector<32x128xf32>, i32 -> vector<32x128xf32>
    %c1_i32_17 = arith.constant 1 : i32
    %19 = vector.broadcast %c1_i32_17 : i32 to vector<32x128xi32>
    %20 = arith.cmpi sge, %10, %19 : vector<32x128xi32>
    %cst_18 = arith.constant 0.000000e+00 : f32
    %21 = vector.broadcast %cst_18 : f32 to vector<32x128xf32>
    %22 = arith.select %20, %18, %21 : vector<32x128xi1>, vector<32x128xf32>
    %23 = vector.broadcast %5 : vector<32x1xf32> to vector<32x128xf32>
    %24 = arith.mulf %23, %22 : vector<32x128xf32>
    %25 = arith.addf %17, %24 : vector<32x128xf32>
    %c127_i32 = arith.constant 127 : i32
    %26 = tpu.dynamic_rotate %15 by %c127_i32 dim 1 : vector<32x128xf32>, i32 -> vector<32x128xf32>
    %c127_i32_19 = arith.constant 127 : i32
    %27 = vector.broadcast %c127_i32_19 : i32 to vector<32x128xi32>
    %28 = arith.cmpi slt, %10, %27 : vector<32x128xi32>
    %cst_20 = arith.constant 0.000000e+00 : f32
    %29 = vector.broadcast %cst_20 : f32 to vector<32x128xf32>
    %30 = arith.select %28, %26, %29 : vector<32x128xi1>, vector<32x128xf32>
    %31 = vector.broadcast %9 : vector<32x1xf32> to vector<32x128xf32>
    %32 = arith.mulf %31, %30 : vector<32x128xf32>
    %33 = arith.addf %25, %32 : vector<32x128xf32>
    %34 = vector.broadcast %2 : vector<32x1xf32> to vector<32x128xf32>
    %35 = arith.addf %33, %34 : vector<32x128xf32>
    %cst_21 = arith.constant dense<0.000000e+00> : vector<32xf32>
    %36 = vector.multi_reduction <add>, %35, %cst_21 [1] : vector<32x128xf32> to vector<32xf32>
    %37 = vector.shape_cast %36 : vector<32xf32> to vector<32x1xf32>
    %cst_22 = arith.constant 7.812500e-03 : f32
    %38 = vector.broadcast %cst_22 : f32 to vector<32x1xf32>
    %39 = arith.mulf %37, %38 : vector<32x1xf32>
    %40 = arith.mulf %3, %39 : vector<32x1xf32>
    %41 = arith.negf %40 : vector<32x1xf32>
    %42 = math.exp %41 : vector<32x1xf32>
    %cst_23 = arith.constant 1.000000e+00 : f32
    %43 = vector.broadcast %cst_23 : f32 to vector<32x1xf32>
    %44 = arith.addf %43, %42 : vector<32x1xf32>
    %45 = arith.divf %43, %44 : vector<32x1xf32>
    %46 = vector.broadcast %45 : vector<32x1xf32> to vector<32x128xf32>
    %47 = arith.mulf %35, %46 : vector<32x128xf32>
    %c0_24 = arith.constant 0 : index
    %c0_25 = arith.constant 0 : index
    %c0_26 = arith.constant 0 : index
    %48 = vector.load %arg7[%c0_24, %c0_25, %c0_26] : memref<1x32x128xf32, #tpu.memory_space<vmem>>, vector<1x32x128xf32>
    %49 = vector.shape_cast %48 : vector<1x32x128xf32> to vector<32x128xf32>
    %50 = vector.shape_cast %47 : vector<32x128xf32> to vector<1x32x128xf32>
    tpu.vector_store %arg7[%c0_24, %c0_25, %c0_26], %50 {strides = array<i32>} : memref<1x32x128xf32, #tpu.memory_space<vmem>>, vector<1x32x128xf32>,
    return
  }
  func.func @transform_0(%arg0: i32) -> (i32, i32, i32) {
    %c0_i32 = arith.constant 0 : i32
    %c0_i32_0 = arith.constant 0 : i32
    %c0_i32_1 = arith.constant 0 : i32
    return %arg0, %c0_i32, %c0_i32_0 : i32, i32, i32
  }
  func.func @transform_1(%arg0: i32) -> (i32, i32) {
    %c0_i32 = arith.constant 0 : i32
    %c0_i32_0 = arith.constant 0 : i32
    %c0_i32_1 = arith.constant 0 : i32
    return %c0_i32, %c0_i32_0 : i32, i32
  }
  func.func @transform_2(%arg0: i32) -> (i32, i32) {
    %c0_i32 = arith.constant 0 : i32
    %c0_i32_0 = arith.constant 0 : i32
    %c0_i32_1 = arith.constant 0 : i32
    return %c0_i32, %c0_i32_0 : i32, i32
  }
  func.func @transform_3(%arg0: i32) -> (i32, i32, i32) {
    %c0_i32 = arith.constant 0 : i32
    %c0_i32_0 = arith.constant 0 : i32
    %c0_i32_1 = arith.constant 0 : i32
    %c0_i32_2 = arith.constant 0 : i32
    return %c0_i32, %c0_i32_0, %c0_i32_1 : i32, i32, i32
  }
  func.func @transform_4(%arg0: i32) -> (i32, i32) {
    %c0_i32 = arith.constant 0 : i32
    %c0_i32_0 = arith.constant 0 : i32
    %c0_i32_1 = arith.constant 0 : i32
    return %c0_i32, %c0_i32_0 : i32, i32
  }
  func.func @transform_5(%arg0: i32) -> (i32, i32) {
    %c0_i32 = arith.constant 0 : i32
    %c0_i32_0 = arith.constant 0 : i32
    %c0_i32_1 = arith.constant 0 : i32
    return %c0_i32, %c0_i32_0 : i32, i32
  }
  func.func @transform_6(%arg0: i32) -> (i32, i32, i32) {
    %c0_i32 = arith.constant 0 : i32
    %c0_i32_0 = arith.constant 0 : i32
    %c0_i32_1 = arith.constant 0 : i32
    return %arg0, %c0_i32, %c0_i32_0 : i32, i32, i32
  }
}

</mosaic_0001>

<llo_original>
// kernel: tpu_custom_call.1
$region0: #{tpu_custom_call.1}
  #allocation0 [shape = 'u32[]', space=smem, size = 0x4, offset = 0x4, fixed_abs, tag = 'smem constant byte address 0x4 - core index']
  #allocation1 [shape = 'u32[144,128]{1,0:T(1,128)}', space=vmem, size = 0x12000, scoped, tag = 'internal scratch']
  %s0 = inlined_call_operand.vmem [shape: bf16[2,32,128], index: 0, kind: input, shape index: {}]
  %s1 = inlined_call_operand.vmem [shape: bf16[32,32], index: 1, kind: input, shape index: {}]
  %s2 = inlined_call_operand.vmem [shape: f32[32,1], index: 2, kind: input, shape index: {}]
  %s3 = inlined_call_operand.vmem [shape: f32[3,32,1], index: 3, kind: input, shape index: {}]
  %s4 = inlined_call_operand.vmem [shape: f32[32,1], index: 4, kind: input, shape index: {}]
  %s5 = inlined_call_operand.vmem [shape: f32[32,1], index: 5, kind: input, shape index: {}]
  %s6 = inlined_call_operand.hbm [shape: f32[2,32,128], index: 6, kind: output, shape index: {}]
  %s7 = sld [smem:[#allocation0]]
  $region57: #{tpu_custom_call.1} parent=0
    _
  %s9 = ssub.s32 1, %s7
  %s10 = scalar_select 0, %s9, %s7
  $region1: #{tpu_custom_call.1} parent=0
    #allocation2 [shape = 'u8[32768]{0}', space=vmem, size = 0x8000, scoped, tag = 'output window, operand 0']
    #allocation3 [shape = 's32[2]{0}', space=sflag, size = 0x8, scoped, tag = 'scoped memory for tpu_custom_call.1']
    %11 = vsyncpa [#allocation3], 0
    %s12 = scalar_lea.sflag [#allocation3], 1
    %13 = vsyncpa %s12, 0
    loop: start=0, step=1, limit=4
    $region2: #{tpu_custom_call.1} parent=1 // loop_pre_header
      _
    $region3: #{tpu_custom_call.1} parent=1 // loop_header
      %s15 = sphi 0, %s19
      %p16 = scmp.ge.s32.totalorder %s15, 4
      %s25 = sphi 0, %s27
      %s28 = sphi 0, %s25
      %s29 = sphi 0, %s28
      %s45 = sphi 0, %s29
      %s49 = sphi 0, %s49
      %s51 = sphi 0, %s49
      %s52 = sphi 0, %s51
      %s66 = sphi 0, %s52
      %s70 = sphi 0, %s70
      %s72 = sphi 0, %s70
      %s73 = sphi 0, %s72
      %s87 = sphi 0, %s73
      %s91 = sphi 0, %s91
      %s93 = sphi 0, %s91
      %s94 = sphi 0, %s93
      %s108 = sphi 0, %s94
      %s112 = sphi 0, %s112
      %s114 = sphi 0, %s112
      %s115 = sphi 0, %s114
      %s129 = sphi 0, %s115
      %s133 = sphi 0, %s133
      %s135 = sphi 0, %s133
      %s136 = sphi 0, %s135
      %s150 = sphi 0, %s136
      %s156 = sphi 0, %s158
      %s159 = sphi 0, %s156
      %s160 = sphi 0, %s159
      %s176 = sphi 0, %s160
    $region4: #{tpu_custom_call.1} parent=1 // loop_header_branch
      %18 = sbr.rel (%p16) target = $region8
    $region5: #{tpu_custom_call.1} parent=1 // loop_body
      %s20 = ssub.s32 %s15, 1
      %s21 = ssub.s32 %s15, 2
      %s22 = sadd.s32 %s15, 1
      %s23 = ssub.s32 %s15, %s22
      %p24 = scmp.eq.s32.totalorder %s23, 0
      %s26 = sadd.s32 %s25, 1
      %s27 = scalar_select %p24, %s25, %s26
      %p30 = pneg %p24
      %p31 = scmp.eq.s32.totalorder %s15, 1
      %p32 = por %p30, %p31
      %p33 = scmp.ne.s32.totalorder %s25, %s28
      %p34 = scmp.eq.s32.totalorder %s15, 0
      %p35 = por %p33, %p34
      %p36 = scmp.ne.s32.totalorder %s25, %s28
      %p37 = scmp.eq.s32.totalorder %s20, 1
      %p38 = por %p36, %p37
      %p39 = scmp.ne.s32.totalorder %s28, %s29
      %p40 = scmp.eq.s32.totalorder %s20, 0
      %p41 = por %p39, %p40
      %p42 = scmp.ne.s32.totalorder %s28, %s29
      %p43 = scmp.eq.s32.totalorder %s21, 1
      %p44 = por %p42, %p43
      %p46 = scmp.ne.s32.totalorder %s29, %s45
      %p47 = scmp.eq.s32.totalorder %s21, 0
      %p48 = por %p46, %p47
      %s50 = sadd.s32 %s49, 1
      %p53 = scmp.eq.s32.totalorder %s15, 1
      %p54 = scmp.ne.s32.totalorder %s49, %s51
      %p55 = scmp.eq.s32.totalorder %s15, 0
      %p56 = por %p54, %p55
      %p57 = scmp.ne.s32.totalorder %s49, %s51
      %p58 = scmp.eq.s32.totalorder %s20, 1
      %p59 = por %p57, %p58
      %p60 = scmp.ne.s32.totalorder %s51, %s52
      %p61 = scmp.eq.s32.totalorder %s20, 0
      %p62 = por %p60, %p61
      %p63 = scmp.ne.s32.totalorder %s51, %s52
      %p64 = scmp.eq.s32.totalorder %s21, 1
      %p65 = por %p63, %p64
      %p67 = scmp.ne.s32.totalorder %s52, %s66
      %p68 = scmp.eq.s32.totalorder %s21, 0
      %p69 = por %p67, %p68
      %s71 = sadd.s32 %s70, 1
      %p74 = scmp.eq.s32.totalorder %s15, 1
      %p75 = scmp.ne.s32.totalorder %s70, %s72
      %p76 = scmp.eq.s32.totalorder %s15, 0
      %p77 = por %p75, %p76
      %p78 = scmp.ne.s32.totalorder %s70, %s72
      %p79 = scmp.eq.s32.totalorder %s20, 1
      %p80 = por %p78, %p79
      %p81 = scmp.ne.s32.totalorder %s72, %s73
      %p82 = scmp.eq.s32.totalorder %s20, 0
      %p83 = por %p81, %p82
      %p84 = scmp.ne.s32.totalorder %s72, %s73
      %p85 = scmp.eq.s32.totalorder %s21, 1
      %p86 = por %p84, %p85
      %p88 = scmp.ne.s32.totalorder %s73, %s87
      %p89 = scmp.eq.s32.totalorder %s21, 0
      %p90 = por %p88, %p89
      %s92 = sadd.s32 %s91, 1
      %p95 = scmp.eq.s32.totalorder %s15, 1
      %p96 = scmp.ne.s32.totalorder %s91, %s93
      %p97 = scmp.eq.s32.totalorder %s15, 0
      %p98 = por %p96, %p97
      %p99 = scmp.ne.s32.totalorder %s91, %s93
      %p100 = scmp.eq.s32.totalorder %s20, 1
      %p101 = por %p99, %p100
      %p102 = scmp.ne.s32.totalorder %s93, %s94
      %p103 = scmp.eq.s32.totalorder %s20, 0
      %p104 = por %p102, %p103
      %p105 = scmp.ne.s32.totalorder %s93, %s94
      %p106 = scmp.eq.s32.totalorder %s21, 1
      %p107 = por %p105, %p106
      %p109 = scmp.ne.s32.totalorder %s94, %s108
      %p110 = scmp.eq.s32.totalorder %s21, 0
      %p111 = por %p109, %p110
      %s113 = sadd.s32 %s112, 1
      %p116 = scmp.eq.s32.totalorder %s15, 1
      %p117 = scmp.ne.s32.totalorder %s112, %s114
      %p118 = scmp.eq.s32.totalorder %s15, 0
      %p119 = por %p117, %p118
      %p120 = scmp.ne.s32.totalorder %s112, %s114
      %p121 = scmp.eq.s32.totalorder %s20, 1
      %p122 = por %p120, %p121
      %p123 = scmp.ne.s32.totalorder %s114, %s115
      %p124 = scmp.eq.s32.totalorder %s20, 0
      %p125 = por %p123, %p124
      %p126 = scmp.ne.s32.totalorder %s114, %s115
      %p127 = scmp.eq.s32.totalorder %s21, 1
      %p128 = por %p126, %p127
      %p130 = scmp.ne.s32.totalorder %s115, %s129
      %p131 = scmp.eq.s32.totalorder %s21, 0
      %p132 = por %p130, %p131
      %s134 = sadd.s32 %s133, 1
      %p137 = scmp.eq.s32.totalorder %s15, 1
      %p138 = scmp.ne.s32.totalorder %s133, %s135
      %p139 = scmp.eq.s32.totalorder %s15, 0
      %p140 = por %p138, %p139
      %p141 = scmp.ne.s32.totalorder %s133, %s135
      %p142 = scmp.eq.s32.totalorder %s20, 1
      %p143 = por %p141, %p142
      %p144 = scmp.ne.s32.totalorder %s135, %s136
      %p145 = scmp.eq.s32.totalorder %s20, 0
      %p146 = por %p144, %p145
      %p147 = scmp.ne.s32.totalorder %s135, %s136
      %p148 = scmp.eq.s32.totalorder %s21, 1
      %p149 = por %p147, %p148
      %p151 = scmp.ne.s32.totalorder %s136, %s150
      %p152 = scmp.eq.s32.totalorder %s21, 0
      %p153 = por %p151, %p152
      %s154 = ssub.s32 %s15, %s22
      %p155 = scmp.eq.s32.totalorder %s154, 0
      %s157 = sadd.s32 %s156, 1
      %s158 = scalar_select %p155, %s156, %s157
      %p161 = pneg %p155
      %p162 = scmp.eq.s32.totalorder %s15, 1
      %p163 = por %p161, %p162
      %p164 = scmp.ne.s32.totalorder %s156, %s159
      %p165 = scmp.eq.s32.totalorder %s15, 0
      %p166 = por %p164, %p165
      %p167 = scmp.ne.s32.totalorder %s156, %s159
      %p168 = scmp.eq.s32.totalorder %s20, 1
      %p169 = por %p167, %p168
      %p170 = scmp.ne.s32.totalorder %s159, %s160
      %p171 = scmp.eq.s32.totalorder %s20, 0
      %p172 = por %p170, %p171
      %p173 = scmp.ne.s32.totalorder %s159, %s160
      %p174 = scmp.eq.s32.totalorder %s21, 1
      %p175 = por %p173, %p174
      %p177 = scmp.ne.s32.totalorder %s160, %s176
      %p178 = scmp.eq.s32.totalorder %s21, 0
      %p179 = por %p177, %p178
      %p180 = scmp.le.s32.totalorder 1, %s15
      %p181 = scmp.lt.s32.totalorder %s15, 3
      %p182 = pnand %p180, %p181
      %p183 = pneg %p182
      // Predicated region
      $region9: #{tpu_custom_call.1} parent=5 // pred_check
        _
      $region10: #{tpu_custom_call.1} parent=5 // pred_check_branch
        %185 = sbr.rel (%p182) target = $region12
      $region11: #{tpu_custom_call.1} parent=5 // pred_region
        %s186 = ssub.s32 %s15, 1
        // Predicated region
        $region13: #{tpu_custom_call.1} parent=11 // pred_check
          %p187 = pneg %p62
        $region14: #{tpu_custom_call.1} parent=11 // pred_check_branch
          %189 = sbr.rel (%p187) target = $region16
        $region15: #{tpu_custom_call.1} parent=11 // pred_region
          _
        $region16: #{tpu_custom_call.1} parent=11 // pred_fallthru
          _
        // Predicated region
        $region17: #{tpu_custom_call.1} parent=11 // pred_check
          %p190 = pneg %p83
        $region18: #{tpu_custom_call.1} parent=11 // pred_check_branch
          %192 = sbr.rel (%p190) target = $region20
        $region19: #{tpu_custom_call.1} parent=11 // pred_region
          _
        $region20: #{tpu_custom_call.1} parent=11 // pred_fallthru
          _
        // Predicated region
        $region21: #{tpu_custom_call.1} parent=11 // pred_check
          %p193 = pneg %p104
        $region22: #{tpu_custom_call.1} parent=11 // pred_check_branch
          %195 = sbr.rel (%p193) target = $region24
        $region23: #{tpu_custom_call.1} parent=11 // pred_region
          _
        $region24: #{tpu_custom_call.1} parent=11 // pred_fallthru
          _
        // Predicated region
        $region25: #{tpu_custom_call.1} parent=11 // pred_check
          %p196 = pneg %p125
        $region26: #{tpu_custom_call.1} parent=11 // pred_check_branch
          %198 = sbr.rel (%p196) target = $region28
        $region27: #{tpu_custom_call.1} parent=11 // pred_region
          _
        $region28: #{tpu_custom_call.1} parent=11 // pred_fallthru
          _
        // Predicated region
        $region29: #{tpu_custom_call.1} parent=11 // pred_check
          %p199 = pneg %p146
        $region30: #{tpu_custom_call.1} parent=11 // pred_check_branch
          %201 = sbr.rel (%p199) target = $region32
        $region31: #{tpu_custom_call.1} parent=11 // pred_region
          _
        $region32: #{tpu_custom_call.1} parent=11 // pred_fallthru
          _
      $region12: #{tpu_custom_call.1} parent=5 // pred_fallthru
        _
      %p202 = scmp.lt.s32.totalorder %s15, 2
      // Predicated region
      $region33: #{tpu_custom_call.1} parent=5 // pred_check
        %p203 = pneg %p202
      $region34: #{tpu_custom_call.1} parent=5 // pred_check_branch
        %205 = sbr.rel (%p203) target = $region36
      $region35: #{tpu_custom_call.1} parent=5 // pred_region
        // Predicated region
        $region37: #{tpu_custom_call.1} parent=35 // pred_check
          %p206 = pneg %p35
        $region38: #{tpu_custom_call.1} parent=35 // pred_check_branch
          %208 = sbr.rel (%p206) target = $region40
        $region39: #{tpu_custom_call.1} parent=35 // pred_region
          %p209 = scmp.lt.s32.totalorder %s15, 1
          %s210 = scalar_select %p209, %s15, 1
          %s211 = smul.addr %s210, 4
          %s212 = smul.addr %s211, 4
          %s213 = scalar_lea.vmem %s0, %s212
        $region40: #{tpu_custom_call.1} parent=35 // pred_fallthru
          _
      $region36: #{tpu_custom_call.1} parent=5 // pred_fallthru
        _
      %p214 = scmp.le.s32.totalorder 1, %s15
      %p215 = scmp.lt.s32.totalorder %s15, 3
      %p216 = pnand %p214, %p215
      %p217 = pneg %p216
      // Predicated region
      $region41: #{tpu_custom_call.1} parent=5 // pred_check
        _
      $region42: #{tpu_custom_call.1} parent=5 // pred_check_branch
        %219 = sbr.rel (%p216) target = $region44
      $region43: #{tpu_custom_call.1} parent=5 // pred_region
        %s220 = ssub.s32 %s15, 1
        %p221 = scmp.lt.s32.totalorder %s20, 1
        %s222 = scalar_select %p221, %s20, 1
        %s223 = smul.addr %s222, 4
        %s224 = smul.addr %s223, 4
        %s225 = scalar_lea.vmem %s0, %s224
        %p226 = pneg %p41
        %p227 = pneg %p38
        %p228 = pneg %p62
        %p229 = pneg %p59
        %p230 = pneg %p83
        %p231 = pneg %p80
        %p232 = pneg %p104
        %p233 = pneg %p101
        %p234 = pneg %p125
        %p235 = pneg %p122
        %p236 = pneg %p146
        %p237 = pneg %p143
        %p238 = pneg %p172
        %p239 = pneg %p169
        %s240 = sand.u32 %s159, 1
        %s241 = scalar_lea.sflag [#allocation3], %s240
        %s242 = sand.u32 %s159, 1
        %s243 = smul.addr %s242, 32
        %s244 = scalar_lea.vmem [#allocation2], %s243
        %p245 = scmp.lt.s32.totalorder %s20, 1
        %s246 = scalar_select %p245, %s20, 1
        %s247 = smul.addr %s246, 4
        %s248 = smul.addr %s247, 4
        %s249 = scalar_lea.vmem %s0, %s248
        %v251 = vld [vmem:[%s1] sm:$0xf]
        %v252 = vld [vmem:[%s1 + $0x4] sm:$0xf]
        %v253 = vld [vmem:[%s1 + $0x8] sm:$0xf]
        %v254 = vld [vmem:[%s1 + $0xc] sm:$0xf]
        %v255 = vld [vmem:[%s2] sm:$0xff]
        %v256 = vld [vmem:[%s2 + $0x8] sm:$0xff]
        %v257 = vld [vmem:[%s2 + $0x10] sm:$0xff]
        %v258 = vld [vmem:[%s2 + $0x18] sm:$0xff]
        %v259 = vld [vmem:[%s4] sm:$0xff]
        %v260 = vld [vmem:[%s4 + $0x8] sm:$0xff]
        %v261 = vld [vmem:[%s4 + $0x10] sm:$0xff]
        %v262 = vld [vmem:[%s4 + $0x18] sm:$0xff]
        %v263 = vld [vmem:[%s5] sm:$0xff]
        %v264 = vld [vmem:[%s5 + $0x8] sm:$0xff]
        %v265 = vld [vmem:[%s5 + $0x10] sm:$0xff]
        %v266 = vld [vmem:[%s5 + $0x18] sm:$0xff]
        %v267 = vld [vmem:[%s3] sm:$0xff]
        %v268 = vld [vmem:[%s3 + $0x8] sm:$0xff]
        %v269 = vld [vmem:[%s3 + $0x10] sm:$0xff]
        %v270 = vld [vmem:[%s3 + $0x18] sm:$0xff]
        %s271 = scalar_lea.vmem %s3, 32
        %v272 = vld [vmem:[%s271] sm:$0xff]
        %v273 = vld [vmem:[%s271 + $0x8] sm:$0xff]
        %v274 = vld [vmem:[%s271 + $0x10] sm:$0xff]
        %v275 = vld [vmem:[%s271 + $0x18] sm:$0xff]
        %s276 = scalar_lea.vmem %s3, 64
        %v277 = vld [vmem:[%s276] sm:$0xff]
        %v278 = vld [vmem:[%s276 + $0x8] sm:$0xff]
        %v279 = vld [vmem:[%s276 + $0x10] sm:$0xff]
        %v280 = vld [vmem:[%s276 + $0x18] sm:$0xff]
        %v281 = vlaneseq
        %v282 = vand.u32 %v281, 127
        %v283 = vld [vmem:[%s249] sm:$0xf]
        %v284 = vld [vmem:[%s249 + $0x4] sm:$0xf]
        %v285 = vld [vmem:[%s249 + $0x8] sm:$0xf]
        %v286 = vld [vmem:[%s249 + $0xc] sm:$0xf]
        %288 = vset.pattern.permute.xlu0 0
        %289 = vperm.xlu0 %288, %v255
        %v290 = vpop.permute.xlu0 %289
        %293 = vset.pattern.permute.xlu0 0
        %294 = vperm.xlu0 %293, %v256
        %v295 = vpop.permute.xlu0 %294
        %298 = vset.pattern.permute.xlu0 0
        %299 = vperm.xlu0 %298, %v257
        %v300 = vpop.permute.xlu0 %299
        %303 = vset.pattern.permute.xlu0 0
        %304 = vperm.xlu0 %303, %v258
        %v305 = vpop.permute.xlu0 %304
        %v311 = vunpack.c.l.b16 %v251
        %v312 = vunpack.c.l.b16 %v252
        %v313 = vunpack.c.l.b16 %v253
        %v314 = vunpack.c.l.b16 %v254
        %v315 = vpack.c.b16 %v312, %v311
        %v316 = vpack.c.b16 %v314, %v313
        %v321 = vunpack.c.l.b16 %v283
        %v322 = vunpack.c.l.b16 %v284
        %v323 = vunpack.c.l.b16 %v285
        %v324 = vunpack.c.l.b16 %v286
        %v325 = vpack.c.b16 %v322, %v321
        %v326 = vpack.c.b16 %v324, %v323
        %vm329 = vcmask 261120
        %v331 = vsel %vm329, %v315, 0
        %v334 = vsel %vm329, %v316, 0
        %336 = vmatprep.subr.bf16.mxu0 0
        %337 = vmatpush1.bf16.msra.mxu0 %v325
        %338 = vmatprep.subr.bf16.mxu0 0
        %339 = vmatpush1.bf16.msra.mxu0 %v326
        %340 = vmatprep.subr.bf16.mxu0 0
        %341 = vmatpush1.bf16.msra.mxu0 0
        %342 = vmatprep.subr.bf16.mxu0 0
        %343 = vmatpush1.bf16.msra.mxu0 0
        %344 = vmatprep.subr.bf16.mxu0 0
        %345 = vmatpush1.bf16.msra.mxu0 0
        %346 = vmatprep.subr.bf16.mxu0 0
        %347 = vmatpush1.bf16.msra.mxu0 0
        %348 = vmatprep.subr.bf16.mxu0 0
        %349 = vmatpush1.bf16.msra.mxu0 0
        %350 = vmatprep.subr.bf16.mxu0 0
        %351 = vmatpush1.bf16.msra.mxu0 0
        %352 = vmatprep.subr.bf16.mxu0 0
        %353 = vmatpush1.bf16.msra.mxu0 0
        %354 = vmatprep.subr.bf16.mxu0 0
        %355 = vmatpush1.bf16.msra.mxu0 0
        %356 = vmatprep.subr.bf16.mxu0 0
        %357 = vmatpush1.bf16.msra.mxu0 0
        %358 = vmatprep.subr.bf16.mxu0 0
        %359 = vmatpush1.bf16.msra.mxu0 0
        %360 = vmatprep.subr.bf16.mxu0 0
        %361 = vmatpush1.bf16.msra.mxu0 0
        %362 = vmatprep.subr.bf16.mxu0 0
        %363 = vmatpush1.bf16.msra.mxu0 0
        %364 = vmatprep.subr.bf16.mxu0 0
        %365 = vmatpush1.bf16.msra.mxu0 0
        %366 = vmatprep.subr.bf16.mxu0 0
        %367 = vmatpush1.bf16.msra.mxu0 0
        %368 = vmatprep.mubr.bf16.mxu0 0
        %369 = vmatmul.mubr.bf16.gmra.mrb[0].mxu0 %v331
        %v370 = vpop.f32.mrb[0].mxu0
        %v371 = vadd.f32 %v290, %v370
        %v372 = vpop.f32.mrb[0].mxu0
        %v373 = vpop.f32.mrb[0].mxu0
        %v374 = vadd.f32 %v295, %v373
        %v375 = vpop.f32.mrb[0].mxu0
        %376 = vmatprep.mubr.bf16.mxu0 0
        %377 = vmatmul.mubr.bf16.gmra.mrb[0].mxu0 %v334
        %v378 = vpop.f32.mrb[0].mxu0
        %v379 = vadd.f32 %v300, %v378
        %v380 = vpop.f32.mrb[0].mxu0
        %v381 = vpop.f32.mrb[0].mxu0
        %v382 = vadd.f32 %v305, %v381
        %v383 = vpop.f32.mrb[0].mxu0
        %384 = vdwg.mxu0
        %386 = vset.pattern.permute.xlu0 0
        %387 = vperm.xlu0 %386, %v272
        %v388 = vpop.permute.xlu0 %387
        %391 = vset.pattern.permute.xlu0 0
        %392 = vperm.xlu0 %391, %v273
        %v393 = vpop.permute.xlu0 %392
        %396 = vset.pattern.permute.xlu0 0
        %397 = vperm.xlu0 %396, %v274
        %v398 = vpop.permute.xlu0 %397
        %401 = vset.pattern.permute.xlu0 0
        %402 = vperm.xlu0 %401, %v275
        %v403 = vpop.permute.xlu0 %402
        %v405 = vmul.f32 %v388, %v371
        %v406 = vmul.f32 %v393, %v374
        %v407 = vmul.f32 %v398, %v379
        %v408 = vmul.f32 %v403, %v382
        %409 = vrot.lane.b32.xlu0 %v371, 1
        %v410 = vpop.permute.xlu0 %409
        %411 = vrot.lane.b32.xlu0 %v374, 1
        %v412 = vpop.permute.xlu0 %411
        %413 = vrot.lane.b32.xlu0 %v379, 1
        %v414 = vpop.permute.xlu0 %413
        %415 = vrot.lane.b32.xlu0 %v382, 1
        %v416 = vpop.permute.xlu0 %415
        %vm417 = vcmp.ge.s32.totalorder %v282, 1
        %v418 = vsel %vm417, %v410, 0.0
        %v419 = vsel %vm417, %v412, 0.0
        %v420 = vsel %vm417, %v414, 0.0
        %v421 = vsel %vm417, %v416, 0.0
        %423 = vset.pattern.permute.xlu0 0
        %424 = vperm.xlu0 %423, %v267
        %v425 = vpop.permute.xlu0 %424
        %428 = vset.pattern.permute.xlu0 0
        %429 = vperm.xlu0 %428, %v268
        %v430 = vpop.permute.xlu0 %429
        %433 = vset.pattern.permute.xlu0 0
        %434 = vperm.xlu0 %433, %v269
        %v435 = vpop.permute.xlu0 %434
        %438 = vset.pattern.permute.xlu0 0
        %439 = vperm.xlu0 %438, %v270
        %v440 = vpop.permute.xlu0 %439
        %v442 = vmul.f32 %v425, %v418
        %v443 = vmul.f32 %v430, %v419
        %v444 = vmul.f32 %v435, %v420
        %v445 = vmul.f32 %v440, %v421
        %v446 = vadd.f32 %v405, %v442
        %v447 = vadd.f32 %v406, %v443
        %v448 = vadd.f32 %v407, %v444
        %v449 = vadd.f32 %v408, %v445
        %450 = vrot.lane.b32.xlu0 %v371, 127
        %v451 = vpop.permute.xlu0 %450
        %452 = vrot.lane.b32.xlu0 %v374, 127
        %v453 = vpop.permute.xlu0 %452
        %454 = vrot.lane.b32.xlu0 %v379, 127
        %v455 = vpop.permute.xlu0 %454
        %456 = vrot.lane.b32.xlu0 %v382, 127
        %v457 = vpop.permute.xlu0 %456
        %vm458 = vcmp.lt.s32.totalorder %v282, 127
        %v459 = vsel %vm458, %v451, 0.0
        %v460 = vsel %vm458, %v453, 0.0
        %v461 = vsel %vm458, %v455, 0.0
        %v462 = vsel %vm458, %v457, 0.0
        %464 = vset.pattern.permute.xlu0 0
        %465 = vperm.xlu0 %464, %v277
        %v466 = vpop.permute.xlu0 %465
        %469 = vset.pattern.permute.xlu0 0
        %470 = vperm.xlu0 %469, %v278
        %v471 = vpop.permute.xlu0 %470
        %474 = vset.pattern.permute.xlu0 0
        %475 = vperm.xlu0 %474, %v279
        %v476 = vpop.permute.xlu0 %475
        %479 = vset.pattern.permute.xlu0 0
        %480 = vperm.xlu0 %479, %v280
        %v481 = vpop.permute.xlu0 %480
        %v483 = vmul.f32 %v466, %v459
        %v484 = vmul.f32 %v471, %v460
        %v485 = vmul.f32 %v476, %v461
        %v486 = vmul.f32 %v481, %v462
        %v487 = vadd.f32 %v446, %v483
        %v488 = vadd.f32 %v447, %v484
        %v489 = vadd.f32 %v448, %v485
        %v490 = vadd.f32 %v449, %v486
        %492 = vset.pattern.permute.xlu0 0
        %493 = vperm.xlu0 %492, %v259
        %v494 = vpop.permute.xlu0 %493
        %497 = vset.pattern.permute.xlu0 0
        %498 = vperm.xlu0 %497, %v260
        %v499 = vpop.permute.xlu0 %498
        %502 = vset.pattern.permute.xlu0 0
        %503 = vperm.xlu0 %502, %v261
        %v504 = vpop.permute.xlu0 %503
        %507 = vset.pattern.permute.xlu0 0
        %508 = vperm.xlu0 %507, %v262
        %v509 = vpop.permute.xlu0 %508
        %v511 = vadd.f32 %v487, %v494
        %v512 = vadd.f32 %v488, %v499
        %v513 = vadd.f32 %v489, %v504
        %v514 = vadd.f32 %v490, %v509
        %515 = vadd.xlane.f32.xlu0 %v511
        %v516 = vpop.xlane.xlu0 %515
        %517 = vadd.xlane.f32.xlu0 %v512
        %v518 = vpop.xlane.xlu0 %517
        %519 = vadd.xlane.f32.xlu0 %v513
        %v520 = vpop.xlane.xlu0 %519
        %521 = vadd.xlane.f32.xlu0 %v514
        %v522 = vpop.xlane.xlu0 %521
        %v523 = vmul.f32 %v516, 0.0078125
        %v524 = vmul.f32 %v518, 0.0078125
        %v525 = vmul.f32 %v520, 0.0078125
        %v526 = vmul.f32 %v522, 0.0078125
        %v527 = vmul.f32 %v263, %v523
        %v528 = vmul.f32 %v264, %v524
        %v529 = vmul.f32 %v265, %v525
        %v530 = vmul.f32 %v266, %v526
        %v531 = vxor.u32 %v527, 2147483648
        %v532 = vxor.u32 %v528, 2147483648
        %v533 = vxor.u32 %v529, 2147483648
        %v534 = vxor.u32 %v530, 2147483648
        %v535 = vmul.f32 %v531, 1.442695
        %v536 = vpow.pop %v535
        %v537 = vmul.f32 %v532, 1.442695
        %v538 = vpow.pop %v537
        %v539 = vmul.f32 %v533, 1.442695
        %v540 = vpow.pop %v539
        %v541 = vmul.f32 %v534, 1.442695
        %v542 = vpow.pop %v541
        %v543 = vadd.f32 %v536, 1.0
        %v544 = vadd.f32 %v538, 1.0
        %v545 = vadd.f32 %v540, 1.0
        %v546 = vadd.f32 %v542, 1.0
        %v547 = vrcp.pop %v543
        %v548 = vmul.f32 1.0, %v547
        %v549 = vrcp.pop %v544
        %v550 = vmul.f32 1.0, %v549
        %v551 = vrcp.pop %v545
        %v552 = vmul.f32 1.0, %v551
        %v553 = vrcp.pop %v546
        %v554 = vmul.f32 1.0, %v553
        %556 = vset.pattern.permute.xlu0 0
        %557 = vperm.xlu0 %556, %v548
        %v558 = vpop.permute.xlu0 %557
        %561 = vset.pattern.permute.xlu0 0
        %562 = vperm.xlu0 %561, %v550
        %v563 = vpop.permute.xlu0 %562
        %566 = vset.pattern.permute.xlu0 0
        %567 = vperm.xlu0 %566, %v552
        %v568 = vpop.permute.xlu0 %567
        %571 = vset.pattern.permute.xlu0 0
        %572 = vperm.xlu0 %571, %v554
        %v573 = vpop.permute.xlu0 %572
        %v575 = vmul.f32 %v511, %v558
        %v576 = vmul.f32 %v512, %v563
        %v577 = vmul.f32 %v513, %v568
        %v578 = vmul.f32 %v514, %v573
        %579 = vst [vmem:[%s244] sm:$0xff] %v575
        %580 = vst [vmem:[%s244 + $0x8] sm:$0xff] %v576
        %581 = vst [vmem:[%s244 + $0x10] sm:$0xff] %v577
        %582 = vst [vmem:[%s244 + $0x18] sm:$0xff] %v578
        %s583 = sand.u32 %s159, 1
        %s584 = scalar_lea.sflag [#allocation3], %s583
        %s585 = sand.u32 %s159, 1
        %s586 = smul.addr %s585, 32
        %s587 = scalar_lea.vmem [#allocation2], %s586
        // Predicated region
        $region45: #{tpu_custom_call.1} parent=43 // pred_check
          %p588 = pneg %p169
        $region46: #{tpu_custom_call.1} parent=43 // pred_check_branch
          %590 = sbr.rel (%p588) target = $region48
        $region47: #{tpu_custom_call.1} parent=43 // pred_region
          %s592 = ssub.s32 512, 512
          %593 = vsyncadd %s584, %s592
          %s594 = smul.addr %s20, 4
          %s595 = smul.addr %s594, 128
          %s596 = scalar_lea.hbm %s6, %s595
          %s597 = sshll.u32 %s587, 4
          %s598 = int_to_ptr.vmem [resolvable:$true] %s597
          %603 = dma.vmem_to_hbm [thread:$0]  %s598, 512, %s596, %s584, 128, 128, 8
        $region48: #{tpu_custom_call.1} parent=43 // pred_fallthru
          _
      $region44: #{tpu_custom_call.1} parent=5 // pred_fallthru
        _
      %p604 = scmp.le.s32.totalorder 2, %s15
      // Predicated region
      $region49: #{tpu_custom_call.1} parent=5 // pred_check
        %p605 = pneg %p604
      $region50: #{tpu_custom_call.1} parent=5 // pred_check_branch
        %607 = sbr.rel (%p605) target = $region52
      $region51: #{tpu_custom_call.1} parent=5 // pred_region
        %s608 = ssub.s32 %s15, 2
        // Predicated region
        $region53: #{tpu_custom_call.1} parent=51 // pred_check
          %p609 = pneg %p175
        $region54: #{tpu_custom_call.1} parent=51 // pred_check_branch
          %611 = sbr.rel (%p609) target = $region56
        $region55: #{tpu_custom_call.1} parent=51 // pred_region
          %s612 = sand.u32 %s160, 1
          %s613 = scalar_lea.sflag [#allocation3], %s612
          %s614 = sand.u32 %s160, 1
          %s615 = smul.addr %s614, 32
          %s616 = scalar_lea.vmem [#allocation2], %s615
          %617 = dma.done %s613, 512
        $region56: #{tpu_custom_call.1} parent=51 // pred_fallthru
          _
      $region52: #{tpu_custom_call.1} parent=5 // pred_fallthru
        _
    $region6: #{tpu_custom_call.1} parent=1 // loop_footer
      %s19 = sadd.s32 1, %s15
    $region7: #{tpu_custom_call.1} parent=1 // loop_footer_branch
      %14 = sbr.rel target = $region3
    $region8: #{tpu_custom_call.1} parent=1 // loop_exit
      _
    %618 = vsyncpa [#allocation3], 1
    %s619 = scalar_lea.sflag [#allocation3], 1
    %620 = vsyncpa %s619, 1

</llo_original>
